<compile_context>
chip_gen: v7x
topology: tpu7x:2x2x1
jax: 0.10.0
libtpu: 0.0.40
codegen_flags: <defaults>
</compile_context>

<pallas_src>
import functools

import jax
import jax.numpy as jnp
from jax import lax
from jax.experimental import pallas as pl
from jax.experimental.pallas import tpu as pltpu


def bottleneck_kernel(x_ref, w1_ref, b1_ref, w2_ref, b2_ref, w3_ref, b3_ref,
                      o_ref, *, H):
    M = o_ref.shape[0]                                # rows in this block (k*H)

    x_bf = x_ref[...]                                 # (M, W*Cin) bf16
    xf = x_bf.astype(jnp.float32)                     # residual path in f32

    # ---- conv1 (1x1) + bn1 (scale folded) + relu: one MXU matmul ----------
    y1 = jnp.dot(x_bf, w1_ref[...], preferred_element_type=jnp.float32)
    y1 = jnp.maximum(y1 + b1_ref[...], 0.0)           # (M, W*Cm) f32

    # ---- conv2 (3x3, stride=1, pad=1) + bn2 + relu: ONE fused matmul ------
    # dy = +/-1 taps are sublane rolls of y1; since M % H == 0 the rolls only
    # wrap at image boundaries, and those rows are exactly the ones zeroed by
    # the (row % H) edge masks.  dx taps + channel mixing live in the banded
    # weights stacked along K offline, so the 3-tap sum is MXU accumulation.
    rowmod = lax.broadcasted_iota(jnp.int32, y1.shape, 0) % H
    top = jnp.where(rowmod == 0, 0.0, pltpu.roll(y1, shift=1, axis=0))
    bot = jnp.where(rowmod == H - 1, 0.0, pltpu.roll(y1, shift=M - 1, axis=0))
    lhs = jnp.concatenate([top, y1, bot], axis=-1).astype(jnp.bfloat16)
    y2 = jnp.dot(lhs, w2_ref[...], preferred_element_type=jnp.float32)
    y2 = jnp.maximum(y2 + b2_ref[...], 0.0)           # (M, W*Cm) f32

    # ---- conv3 (1x1, bias folded through bn3) + identity residual + relu --
    y3 = jnp.dot(y2.astype(jnp.bfloat16), w3_ref[...],
                 preferred_element_type=jnp.float32)  # (M, W*Co) f32
    o_ref[...] = jnp.maximum(y3 + b3_ref[...] + xf, 0.0).astype(o_ref.dtype)


def _images_per_block(N, H, target_rows=256):
    """Images per grid step: big M blocks, but >= 2 steps when N >= 2 (v7x TCs)."""
    ipb = max(1, min(max(target_rows // H, 1), N))
    if N >= 2 and N // ipb < 2:
        ipb = max(1, N // 2)
    while N % ipb:
        ipb -= 1
    return ipb


def bottleneck_forward_nhwc(x_nhwc, kp):
    """x_nhwc: (N, H, W, Cin) -> (N, H, W, Co) bfloat16."""
    N, H, W, Cin = x_nhwc.shape
    WCin = W * Cin
    WCm = kp["w1_bd"].shape[1]
    WCo = kp["w3_bd"].shape[1]
    Co = WCo // W
    assert Cin == Co, "identity residual (downsample=None) requires inp == outp*4"
    assert kp["w1_bd"].shape[0] == WCin

    ipb = _images_per_block(N, H)
    block_M = ipb * H
    num_blocks = N // ipb
    # (8,128) block constraints on the slab BlockSpecs.
    assert block_M % 8 == 0 or block_M == N * H, (block_M, H)

    # VMEM sanity guard for the kron/banded design (see TODO at top of file).
    weight_bytes = 2 * (kp["w1_bd"].size + kp["w2_cat"].size + kp["w3_bd"].size)
    assert weight_bytes < 24 * 1024 * 1024, (
        "kron/banded weights too large for VMEM; switch to channel-contraction layout")

    # Pure metadata reshape: NHWC contiguous -> lane-dense (N*H, W*Cin) slab,
    # bf16 HBM I/O (kernel is bandwidth/overhead bound at these shapes).
    x_slab = x_nhwc.astype(jnp.bfloat16).reshape(N * H, WCin)

    const = lambda r: (0, 0)

    out = pl.pallas_call(
        functools.partial(bottleneck_kernel, H=H),
        out_shape=jax.ShapeDtypeStruct((N * H, WCo), jnp.bfloat16),
        grid_spec=pltpu.PrefetchScalarGridSpec(
            num_scalar_prefetch=0,
            grid=(num_blocks,),
            in_specs=[
                pl.BlockSpec((block_M, WCin), lambda r: (r, 0)),   # x slab
                pl.BlockSpec(kp["w1_bd"].shape, const),            # resident weights
                pl.BlockSpec(kp["b1"].shape, const),
                pl.BlockSpec(kp["w2_cat"].shape, const),
                pl.BlockSpec(kp["b2"].shape, const),
                pl.BlockSpec(kp["w3_bd"].shape, const),
                pl.BlockSpec(kp["b3"].shape, const),
            ],
            out_specs=pl.BlockSpec((block_M, WCo), lambda r: (r, 0)),
        ),
        compiler_params=pltpu.CompilerParams(
            dimension_semantics=("parallel",)),                    # 2 TCs on v7x
    )(x_slab, kp["w1_bd"], kp["b1"], kp["w2_cat"], kp["b2"],
      kp["w3_bd"], kp["b3"])

    return out.reshape(N, H, W, Co)


def bottleneck_forward(x_nchw, kp):
    # Boundary glue only, to match the PyTorch NCHW interface.  Prefer the
    # NHWC entry point above to avoid the two HBM transposes entirely.
    x_nhwc = jnp.transpose(x_nchw, (0, 2, 3, 1))
    out = bottleneck_forward_nhwc(x_nhwc, kp)
    return jnp.transpose(out, (0, 3, 1, 2))


# ---------------------------------------------------------------------------
# Parameter construction (host side, runs once)
# ---------------------------------------------------------------------------
def init_params(key, inp, outp):
    """Raw (PyTorch-equivalent) parameters; BatchNorm in eval mode."""
    eps = 1e-5
    Cm, Co = outp, outp * 4
    assert Co == inp, "downsample=None residual requires inp == outp*4"
    ks = jax.random.split(key, 16)

    def bn_fold(kg, kb, km, kv, C):
        gamma = jax.random.uniform(kg, (C,), jnp.float32, 0.5, 1.5)
        beta = jax.random.normal(kb, (C,), jnp.float32) * 0.1
        rmean = jax.random.normal(km, (C,), jnp.float32) * 0.1
        rvar = jax.random.uniform(kv, (C,), jnp.float32, 0.5, 1.5)
        scale = gamma / jnp.sqrt(rvar + eps)
        shift = beta - rmean * scale
        return scale, shift

    w1 = jax.random.normal(ks[0], (inp, Cm), jnp.float32) * 0.1        # Cin x Cm
    s1, b1 = bn_fold(ks[1], ks[2], ks[3], ks[4], Cm)
    w2 = jax.random.normal(ks[5], (3, 3, Cm, Cm), jnp.float32) * 0.1   # HWIO
    s2, b2 = bn_fold(ks[6], ks[7], ks[8], ks[9], Cm)
    w3 = jax.random.normal(ks[10], (Cm, Co), jnp.float32) * 0.1        # Cm x Co
    bias3 = jax.random.normal(ks[11], (Co,), jnp.float32) * 0.1        # conv3 bias=True
    s3, b3 = bn_fold(ks[12], ks[13], ks[14], ks[15], Co)

    return dict(w1=w1, s1=s1, b1=b1, w2=w2, s2=s2, b2=b2,
                w3=w3, bias3=bias3, s3=s3, b3=b3)


def pack_params(raw, W):
    """Fold BN scales into weights; build lane-dense slab-layout operands."""
    Cin, Cm = raw["w1"].shape
    Co = raw["w3"].shape[1]
    eyeW = jnp.eye(W, dtype=jnp.float32)

    # conv1: block-diagonal (W*Cin, W*Cm), BN1 scale folded per output channel
    w1f = raw["w1"] * raw["s1"][None, :]
    w1_bd = jnp.kron(eyeW, w1f).astype(jnp.bfloat16)
    b1 = jnp.tile(raw["b1"], W).reshape(1, W * Cm).astype(jnp.float32)

    # conv2: per-dy banded (W*Cm, W*Cm) matrices (dx taps + channels), then
    # stacked along K -> single (3*W*Cm, W*Cm) weight for the fused matmul.
    w2f = raw["w2"] * raw["s2"][None, None, None, :]
    bands = []
    for dy in range(3):
        B = jnp.zeros((W * Cm, W * Cm), jnp.float32)
        for dx in range(3):
            B = B + jnp.kron(jnp.eye(W, k=1 - dx, dtype=jnp.float32), w2f[dy, dx])
        bands.append(B)
    w2_cat = jnp.concatenate(bands, axis=0).astype(jnp.bfloat16)       # (3*W*Cm, W*Cm)
    b2 = jnp.tile(raw["b2"], W).reshape(1, W * Cm).astype(jnp.float32)

    # conv3: block-diagonal (W*Cm, W*Co), conv3 bias folded through bn3
    w3f = raw["w3"] * raw["s3"][None, :]
    w3_bd = jnp.kron(eyeW, w3f).astype(jnp.bfloat16)
    b3_full = raw["s3"] * raw["bias3"] + raw["b3"]
    b3 = jnp.tile(b3_full, W).reshape(1, W * Co).astype(jnp.float32)

    return dict(w1_bd=w1_bd, b1=b1, w2_cat=w2_cat, b2=b2, w3_bd=w3_bd, b3=b3)


# ---------------------------------------------------------------------------
# Pure-JAX reference (same math, f32 throughout) for correctness checking
# ---------------------------------------------------------------------------
def ref_forward(x_nchw, raw):
    x = jnp.transpose(x_nchw, (0, 2, 3, 1)).astype(jnp.float32)
    y = jnp.einsum("nhwc,cd->nhwd", x, raw["w1"])
    y = jnp.maximum(y * raw["s1"] + raw["b1"], 0.0)
    y = lax.conv_general_dilated(y, raw["w2"], (1, 1), ((1, 1), (1, 1)),
                                 dimension_numbers=("NHWC", "HWIO", "NHWC"))
    y = jnp.maximum(y * raw["s2"] + raw["b2"], 0.0)
    y = jnp.einsum("nhwc,cd->nhwd", y, raw["w3"]) + raw["bias3"]
    y = y * raw["s3"] + raw["b3"]
    y = jnp.maximum(y + x, 0.0)
    return jnp.transpose(y, (0, 3, 1, 2))


if __name__ == "__main__":
    key = jax.random.PRNGKey(0)
    kx, kp_key = jax.random.split(key)

    inp, outp = 16, 4                   # outp*4 == inp -> identity residual valid
    N, H, W = 2, 16, 16
    x = jax.random.normal(kx, (N, inp, H, W), jnp.float32)    # NCHW, as in PyTorch

    raw = init_params(kp_key, inp, outp)
    kparams = pack_params(raw, W)

    out = jax.block_until_ready(bottleneck_forward(x, kparams))
    ref = jax.block_until_ready(ref_forward(x, raw))

    assert out.shape == (N, inp, H, W), out.shape
    out_f32 = out.astype(jnp.float32)
    assert bool(jnp.all(jnp.isfinite(out_f32)))
    max_err = float(jnp.max(jnp.abs(out_f32 - ref)))
    # tolerance covers intentional bf16 weights/activations AND bf16 HBM I/O
    assert bool(jnp.allclose(out_f32, ref, atol=3e-2, rtol=3e-2)), max_err
    print("KERNEL_OK")
</pallas_src>

<mosaic_0001>
module attributes {stable_mosaic.version = 11 : i64} {
  func.func @bottleneck_kernel(%arg0: i32, %arg1: memref<16x256xbf16, #tpu.memory_space<vmem>>, %arg2: memref<256x64xbf16, #tpu.memory_space<vmem>>, %arg3: memref<1x64xf32, #tpu.memory_space<vmem>>, %arg4: memref<192x64xbf16, #tpu.memory_space<vmem>>, %arg5: memref<1x64xf32, #tpu.memory_space<vmem>>, %arg6: memref<64x256xbf16, #tpu.memory_space<vmem>>, %arg7: memref<1x256xf32, #tpu.memory_space<vmem>>, %arg8: memref<16x256xbf16, #tpu.memory_space<vmem>>) attributes {dimension_semantics = [#tpu.dimension_semantics<parallel>], iteration_bounds = array<i64: 2>, scalar_prefetch = 0 : i64, scratch_operands = 0 : i64, tpu.core_type = #tpu.core_type<tc>, window_params = [{transform_indices = @transform_0, window_bounds = array<i64: 16, 256>}, {pipeline_mode = #tpu.pipeline_mode<synchronous>, transform_indices = @transform_1, window_bounds = array<i64: 256, 64>}, {pipeline_mode = #tpu.pipeline_mode<synchronous>, transform_indices = @transform_2, window_bounds = array<i64: 1, 64>}, {pipeline_mode = #tpu.pipeline_mode<synchronous>, transform_indices = @transform_3, window_bounds = array<i64: 192, 64>}, {pipeline_mode = #tpu.pipeline_mode<synchronous>, transform_indices = @transform_4, window_bounds = array<i64: 1, 64>}, {pipeline_mode = #tpu.pipeline_mode<synchronous>, transform_indices = @transform_5, window_bounds = array<i64: 64, 256>}, {pipeline_mode = #tpu.pipeline_mode<synchronous>, transform_indices = @transform_6, window_bounds = array<i64: 1, 256>}, {transform_indices = @transform_7, window_bounds = array<i64: 16, 256>}]} {
    %c0 = arith.constant 0 : index
    %c0_0 = arith.constant 0 : index
    %0 = vector.load %arg1[%c0, %c0_0] : memref<16x256xbf16, #tpu.memory_space<vmem>>, vector<16x256xbf16>
    %1 = arith.extf %0 : vector<16x256xbf16> to vector<16x256xf32>
    %c0_1 = arith.constant 0 : index
    %c0_2 = arith.constant 0 : index
    %2 = vector.load %arg2[%c0_1, %c0_2] : memref<256x64xbf16, #tpu.memory_space<vmem>>, vector<256x64xbf16>
    %cst = arith.constant dense<0.000000e+00> : vector<16x64xf32>
    %3 = tpu.matmul %0, %2, %cst {dimension_numbers = #tpu.dot_dimension_numbers<[1], [0], [0], [1], [0, 0, 1, 1], [], []>} : vector<16x256xbf16>, vector<256x64xbf16>, vector<16x64xf32> -> vector<16x64xf32>
    %c0_3 = arith.constant 0 : index
    %c0_4 = arith.constant 0 : index
    %4 = vector.load %arg3[%c0_3, %c0_4] : memref<1x64xf32, #tpu.memory_space<vmem>>, vector<1x64xf32>
    %5 = vector.broadcast %4 : vector<1x64xf32> to vector<16x64xf32>
    %6 = arith.addf %3, %5 : vector<16x64xf32>
    %cst_5 = arith.constant 0.000000e+00 : f32
    %7 = vector.broadcast %cst_5 : f32 to vector<16x64xf32>
    %8 = arith.maximumf %6, %7 : vector<16x64xf32>
    %9 = tpu.iota {dimensions = array<i32: 0>} : vector<16x64xi32>
    %c16_i32 = arith.constant 16 : i32
    %c0_i32 = arith.constant 0 : i32
    %10 = arith.cmpi eq, %c16_i32, %c0_i32 : i32
    %c1_i32 = arith.constant 1 : i32
    %11 = arith.select %10, %c1_i32, %c16_i32 : i32
    %12 = vector.broadcast %11 : i32 to vector<16x64xi32>
    %13 = arith.remsi %9, %12 : vector<16x64xi32>
    %c0_i32_6 = arith.constant 0 : i32
    %14 = vector.broadcast %c0_i32_6 : i32 to vector<16x64xi32>
    %15 = arith.cmpi ne, %13, %14 : vector<16x64xi32>
    %c0_i32_7 = arith.constant 0 : i32
    %16 = vector.broadcast %c0_i32_7 : i32 to vector<16x64xi32>
    %17 = arith.cmpi slt, %13, %16 : vector<16x64xi32>
    %c0_i32_8 = arith.constant 0 : i32
    %18 = arith.cmpi slt, %11, %c0_i32_8 : i32
    %19 = vector.broadcast %18 : i1 to vector<16x64xi1>
    %20 = vector.broadcast %19 : vector<16x64xi1> to vector<16x64xi1>
    %21 = arith.xori %17, %20 : vector<16x64xi1>
    %22 = arith.andi %21, %15 : vector<16x64xi1>
    %23 = vector.broadcast %11 : i32 to vector<16x64xi32>
    %24 = arith.addi %13, %23 : vector<16x64xi32>
    %25 = arith.select %22, %24, %13 : vector<16x64xi1>, vector<16x64xi32>
    %c0_i32_9 = arith.constant 0 : i32
    %26 = vector.broadcast %c0_i32_9 : i32 to vector<16x64xi32>
    %27 = arith.cmpi eq, %25, %26 : vector<16x64xi32>
    %c1_i32_10 = arith.constant 1 : i32
    %28 = tpu.dynamic_rotate %8 by %c1_i32_10 dim 0 : vector<16x64xf32>, i32 -> vector<16x64xf32>
    %cst_11 = arith.constant 0.000000e+00 : f32
    %29 = vector.broadcast %cst_11 : f32 to vector<16x64xf32>
    %30 = arith.select %27, %29, %28 : vector<16x64xi1>, vector<16x64xf32>
    %c15_i32 = arith.constant 15 : i32
    %31 = vector.broadcast %c15_i32 : i32 to vector<16x64xi32>
    %32 = arith.cmpi eq, %25, %31 : vector<16x64xi32>
    %c15_i32_12 = arith.constant 15 : i32
    %33 = tpu.dynamic_rotate %8 by %c15_i32_12 dim 0 : vector<16x64xf32>, i32 -> vector<16x64xf32>
    %cst_13 = arith.constant 0.000000e+00 : f32
    %34 = vector.broadcast %cst_13 : f32 to vector<16x64xf32>
    %35 = arith.select %32, %34, %33 : vector<16x64xi1>, vector<16x64xf32>
    %36 = tpu.concatenate %30, %8, %35 in 1 : vector<16x64xf32>, vector<16x64xf32>, vector<16x64xf32> -> vector<16x192xf32>
    %37 = arith.truncf %36 : vector<16x192xf32> to vector<16x192xbf16>
    %c0_14 = arith.constant 0 : index
    %c0_15 = arith.constant 0 : index
    %38 = vector.load %arg4[%c0_14, %c0_15] : memref<192x64xbf16, #tpu.memory_space<vmem>>, vector<192x64xbf16>
    %cst_16 = arith.constant dense<0.000000e+00> : vector<16x64xf32>
    %39 = tpu.matmul %37, %38, %cst_16 {dimension_numbers = #tpu.dot_dimension_numbers<[1], [0], [0], [1], [0, 0, 1, 1], [], []>} : vector<16x192xbf16>, vector<192x64xbf16>, vector<16x64xf32> -> vector<16x64xf32>
    %c0_17 = arith.constant 0 : index
    %c0_18 = arith.constant 0 : index
    %40 = vector.load %arg5[%c0_17, %c0_18] : memref<1x64xf32, #tpu.memory_space<vmem>>, vector<1x64xf32>
    %41 = vector.broadcast %40 : vector<1x64xf32> to vector<16x64xf32>
    %42 = arith.addf %39, %41 : vector<16x64xf32>
    %cst_19 = arith.constant 0.000000e+00 : f32
    %43 = vector.broadcast %cst_19 : f32 to vector<16x64xf32>
    %44 = arith.maximumf %42, %43 : vector<16x64xf32>
    %45 = arith.truncf %44 : vector<16x64xf32> to vector<16x64xbf16>
    %c0_20 = arith.constant 0 : index
    %c0_21 = arith.constant 0 : index
    %46 = vector.load %arg6[%c0_20, %c0_21] : memref<64x256xbf16, #tpu.memory_space<vmem>>, vector<64x256xbf16>
    %cst_22 = arith.constant dense<0.000000e+00> : vector<16x256xf32>
    %47 = tpu.matmul %45, %46, %cst_22 {dimension_numbers = #tpu.dot_dimension_numbers<[1], [0], [0], [1], [0, 0, 1, 1], [], []>} : vector<16x64xbf16>, vector<64x256xbf16>, vector<16x256xf32> -> vector<16x256xf32>
    %c0_23 = arith.constant 0 : index
    %c0_24 = arith.constant 0 : index
    %48 = vector.load %arg7[%c0_23, %c0_24] : memref<1x256xf32, #tpu.memory_space<vmem>>, vector<1x256xf32>
    %49 = vector.broadcast %48 : vector<1x256xf32> to vector<16x256xf32>
    %50 = arith.addf %47, %49 : vector<16x256xf32>
    %51 = arith.addf %50, %1 : vector<16x256xf32>
    %cst_25 = arith.constant 0.000000e+00 : f32
    %52 = vector.broadcast %cst_25 : f32 to vector<16x256xf32>
    %53 = arith.maximumf %51, %52 : vector<16x256xf32>
    %54 = arith.truncf %53 : vector<16x256xf32> to vector<16x256xbf16>
    %c0_26 = arith.constant 0 : index
    %c0_27 = arith.constant 0 : index
    %55 = vector.load %arg8[%c0_26, %c0_27] : memref<16x256xbf16, #tpu.memory_space<vmem>>, vector<16x256xbf16>
    tpu.vector_store %arg8[%c0_26, %c0_27], %54 {strides = array<i32>} : memref<16x256xbf16, #tpu.memory_space<vmem>>, vector<16x256xbf16>,
    return
  }
  func.func @transform_0(%arg0: i32) -> (i32, i32) {
    %c0_i32 = arith.constant 0 : i32
    %c0_i32_0 = arith.constant 0 : i32
    return %arg0, %c0_i32 : i32, i32
  }
  func.func @transform_1(%arg0: i32) -> (i32, i32) {
    %c0_i32 = arith.constant 0 : i32
    %c0_i32_0 = arith.constant 0 : i32
    %c0_i32_1 = arith.constant 0 : i32
    return %c0_i32, %c0_i32_0 : i32, i32
  }
  func.func @transform_2(%arg0: i32) -> (i32, i32) {
    %c0_i32 = arith.constant 0 : i32
    %c0_i32_0 = arith.constant 0 : i32
    %c0_i32_1 = arith.constant 0 : i32
    return %c0_i32, %c0_i32_0 : i32, i32
  }
  func.func @transform_3(%arg0: i32) -> (i32, i32) {
    %c0_i32 = arith.constant 0 : i32
    %c0_i32_0 = arith.constant 0 : i32
    %c0_i32_1 = arith.constant 0 : i32
    return %c0_i32, %c0_i32_0 : i32, i32
  }
  func.func @transform_4(%arg0: i32) -> (i32, i32) {
    %c0_i32 = arith.constant 0 : i32
    %c0_i32_0 = arith.constant 0 : i32
    %c0_i32_1 = arith.constant 0 : i32
    return %c0_i32, %c0_i32_0 : i32, i32
  }
  func.func @transform_5(%arg0: i32) -> (i32, i32) {
    %c0_i32 = arith.constant 0 : i32
    %c0_i32_0 = arith.constant 0 : i32
    %c0_i32_1 = arith.constant 0 : i32
    return %c0_i32, %c0_i32_0 : i32, i32
  }
  func.func @transform_6(%arg0: i32) -> (i32, i32) {
    %c0_i32 = arith.constant 0 : i32
    %c0_i32_0 = arith.constant 0 : i32
    %c0_i32_1 = arith.constant 0 : i32
    return %c0_i32, %c0_i32_0 : i32, i32
  }
  func.func @transform_7(%arg0: i32) -> (i32, i32) {
    %c0_i32 = arith.constant 0 : i32
    %c0_i32_0 = arith.constant 0 : i32
    return %arg0, %c0_i32 : i32, i32
  }
}

</mosaic_0001>

<llo_original>
// kernel: tpu_custom_call.1
$region0: #{tpu_custom_call.1}
  #allocation0 [shape = 'u32[]', space=smem, size = 0x4, offset = 0x4, fixed_abs, tag = 'smem constant byte address 0x4 - core index']
  #allocation1 [shape = 'u32[144,128]{1,0:T(1,128)}', space=vmem, size = 0x12000, scoped, tag = 'internal scratch']
  %s0 = inlined_call_operand.vmem [shape: bf16[32,256], index: 0, kind: input, shape index: {}]
  %s1 = inlined_call_operand.vmem [shape: bf16[256,64], index: 1, kind: input, shape index: {}]
  %s2 = inlined_call_operand.vmem [shape: f32[1,64], index: 2, kind: input, shape index: {}]
  %s3 = inlined_call_operand.vmem [shape: bf16[192,64], index: 3, kind: input, shape index: {}]
  %s4 = inlined_call_operand.vmem [shape: f32[1,64], index: 4, kind: input, shape index: {}]
  %s5 = inlined_call_operand.vmem [shape: bf16[64,256], index: 5, kind: input, shape index: {}]
  %s6 = inlined_call_operand.vmem [shape: f32[1,256], index: 6, kind: input, shape index: {}]
  %s7 = inlined_call_operand.hbm [shape: bf16[32,256], index: 7, kind: output, shape index: {}]
  %s8 = sld [smem:[#allocation0]]
  $region61: #{tpu_custom_call.1} parent=0
    _
  %s10 = ssub.s32 1, %s8
  %s11 = scalar_select 0, %s10, %s8
  $region1: #{tpu_custom_call.1} parent=0
    #allocation2 [shape = 'u8[16384]{0}', space=vmem, size = 0x4000, scoped, tag = 'output window, operand 0']
    #allocation3 [shape = 's32[2]{0}', space=sflag, size = 0x8, scoped, tag = 'scoped memory for tpu_custom_call.1']
    %12 = vsyncpa [#allocation3], 0
    %s13 = scalar_lea.sflag [#allocation3], 1
    %14 = vsyncpa %s13, 0
    loop: start=0, step=1, limit=4
    $region2: #{tpu_custom_call.1} parent=1 // loop_pre_header
      _
    $region3: #{tpu_custom_call.1} parent=1 // loop_header
      %s16 = sphi 0, %s20
      %p17 = scmp.ge.s32.totalorder %s16, 4
      %s26 = sphi 0, %s28
      %s29 = sphi 0, %s26
      %s30 = sphi 0, %s29
      %s46 = sphi 0, %s30
      %s50 = sphi 0, %s50
      %s52 = sphi 0, %s50
      %s53 = sphi 0, %s52
      %s67 = sphi 0, %s53
      %s71 = sphi 0, %s71
      %s73 = sphi 0, %s71
      %s74 = sphi 0, %s73
      %s88 = sphi 0, %s74
      %s92 = sphi 0, %s92
      %s94 = sphi 0, %s92
      %s95 = sphi 0, %s94
      %s109 = sphi 0, %s95
      %s113 = sphi 0, %s113
      %s115 = sphi 0, %s113
      %s116 = sphi 0, %s115
      %s130 = sphi 0, %s116
      %s134 = sphi 0, %s134
      %s136 = sphi 0, %s134
      %s137 = sphi 0, %s136
      %s151 = sphi 0, %s137
      %s155 = sphi 0, %s155
      %s157 = sphi 0, %s155
      %s158 = sphi 0, %s157
      %s172 = sphi 0, %s158
      %s178 = sphi 0, %s180
      %s181 = sphi 0, %s178
      %s182 = sphi 0, %s181
      %s198 = sphi 0, %s182
    $region4: #{tpu_custom_call.1} parent=1 // loop_header_branch
      %19 = sbr.rel (%p17) target = $region8
    $region5: #{tpu_custom_call.1} parent=1 // loop_body
      %s21 = ssub.s32 %s16, 1
      %s22 = ssub.s32 %s16, 2
      %s23 = sadd.s32 %s16, 1
      %s24 = ssub.s32 %s16, %s23
      %p25 = scmp.eq.s32.totalorder %s24, 0
      %s27 = sadd.s32 %s26, 1
      %s28 = scalar_select %p25, %s26, %s27
      %p31 = pneg %p25
      %p32 = scmp.eq.s32.totalorder %s16, 1
      %p33 = por %p31, %p32
      %p34 = scmp.ne.s32.totalorder %s26, %s29
      %p35 = scmp.eq.s32.totalorder %s16, 0
      %p36 = por %p34, %p35
      %p37 = scmp.ne.s32.totalorder %s26, %s29
      %p38 = scmp.eq.s32.totalorder %s21, 1
      %p39 = por %p37, %p38
      %p40 = scmp.ne.s32.totalorder %s29, %s30
      %p41 = scmp.eq.s32.totalorder %s21, 0
      %p42 = por %p40, %p41
      %p43 = scmp.ne.s32.totalorder %s29, %s30
      %p44 = scmp.eq.s32.totalorder %s22, 1
      %p45 = por %p43, %p44
      %p47 = scmp.ne.s32.totalorder %s30, %s46
      %p48 = scmp.eq.s32.totalorder %s22, 0
      %p49 = por %p47, %p48
      %s51 = sadd.s32 %s50, 1
      %p54 = scmp.eq.s32.totalorder %s16, 1
      %p55 = scmp.ne.s32.totalorder %s50, %s52
      %p56 = scmp.eq.s32.totalorder %s16, 0
      %p57 = por %p55, %p56
      %p58 = scmp.ne.s32.totalorder %s50, %s52
      %p59 = scmp.eq.s32.totalorder %s21, 1
      %p60 = por %p58, %p59
      %p61 = scmp.ne.s32.totalorder %s52, %s53
      %p62 = scmp.eq.s32.totalorder %s21, 0
      %p63 = por %p61, %p62
      %p64 = scmp.ne.s32.totalorder %s52, %s53
      %p65 = scmp.eq.s32.totalorder %s22, 1
      %p66 = por %p64, %p65
      %p68 = scmp.ne.s32.totalorder %s53, %s67
      %p69 = scmp.eq.s32.totalorder %s22, 0
      %p70 = por %p68, %p69
      %s72 = sadd.s32 %s71, 1
      %p75 = scmp.eq.s32.totalorder %s16, 1
      %p76 = scmp.ne.s32.totalorder %s71, %s73
      %p77 = scmp.eq.s32.totalorder %s16, 0
      %p78 = por %p76, %p77
      %p79 = scmp.ne.s32.totalorder %s71, %s73
      %p80 = scmp.eq.s32.totalorder %s21, 1
      %p81 = por %p79, %p80
      %p82 = scmp.ne.s32.totalorder %s73, %s74
      %p83 = scmp.eq.s32.totalorder %s21, 0
      %p84 = por %p82, %p83
      %p85 = scmp.ne.s32.totalorder %s73, %s74
      %p86 = scmp.eq.s32.totalorder %s22, 1
      %p87 = por %p85, %p86
      %p89 = scmp.ne.s32.totalorder %s74, %s88
      %p90 = scmp.eq.s32.totalorder %s22, 0
      %p91 = por %p89, %p90
      %s93 = sadd.s32 %s92, 1
      %p96 = scmp.eq.s32.totalorder %s16, 1
      %p97 = scmp.ne.s32.totalorder %s92, %s94
      %p98 = scmp.eq.s32.totalorder %s16, 0
      %p99 = por %p97, %p98
      %p100 = scmp.ne.s32.totalorder %s92, %s94
      %p101 = scmp.eq.s32.totalorder %s21, 1
      %p102 = por %p100, %p101
      %p103 = scmp.ne.s32.totalorder %s94, %s95
      %p104 = scmp.eq.s32.totalorder %s21, 0
      %p105 = por %p103, %p104
      %p106 = scmp.ne.s32.totalorder %s94, %s95
      %p107 = scmp.eq.s32.totalorder %s22, 1
      %p108 = por %p106, %p107
      %p110 = scmp.ne.s32.totalorder %s95, %s109
      %p111 = scmp.eq.s32.totalorder %s22, 0
      %p112 = por %p110, %p111
      %s114 = sadd.s32 %s113, 1
      %p117 = scmp.eq.s32.totalorder %s16, 1
      %p118 = scmp.ne.s32.totalorder %s113, %s115
      %p119 = scmp.eq.s32.totalorder %s16, 0
      %p120 = por %p118, %p119
      %p121 = scmp.ne.s32.totalorder %s113, %s115
      %p122 = scmp.eq.s32.totalorder %s21, 1
      %p123 = por %p121, %p122
      %p124 = scmp.ne.s32.totalorder %s115, %s116
      %p125 = scmp.eq.s32.totalorder %s21, 0
      %p126 = por %p124, %p125
      %p127 = scmp.ne.s32.totalorder %s115, %s116
      %p128 = scmp.eq.s32.totalorder %s22, 1
      %p129 = por %p127, %p128
      %p131 = scmp.ne.s32.totalorder %s116, %s130
      %p132 = scmp.eq.s32.totalorder %s22, 0
      %p133 = por %p131, %p132
      %s135 = sadd.s32 %s134, 1
      %p138 = scmp.eq.s32.totalorder %s16, 1
      %p139 = scmp.ne.s32.totalorder %s134, %s136
      %p140 = scmp.eq.s32.totalorder %s16, 0
      %p141 = por %p139, %p140
      %p142 = scmp.ne.s32.totalorder %s134, %s136
      %p143 = scmp.eq.s32.totalorder %s21, 1
      %p144 = por %p142, %p143
      %p145 = scmp.ne.s32.totalorder %s136, %s137
      %p146 = scmp.eq.s32.totalorder %s21, 0
      %p147 = por %p145, %p146
      %p148 = scmp.ne.s32.totalorder %s136, %s137
      %p149 = scmp.eq.s32.totalorder %s22, 1
      %p150 = por %p148, %p149
      %p152 = scmp.ne.s32.totalorder %s137, %s151
      %p153 = scmp.eq.s32.totalorder %s22, 0
      %p154 = por %p152, %p153
      %s156 = sadd.s32 %s155, 1
      %p159 = scmp.eq.s32.totalorder %s16, 1
      %p160 = scmp.ne.s32.totalorder %s155, %s157
      %p161 = scmp.eq.s32.totalorder %s16, 0
      %p162 = por %p160, %p161
      %p163 = scmp.ne.s32.totalorder %s155, %s157
      %p164 = scmp.eq.s32.totalorder %s21, 1
      %p165 = por %p163, %p164
      %p166 = scmp.ne.s32.totalorder %s157, %s158
      %p167 = scmp.eq.s32.totalorder %s21, 0
      %p168 = por %p166, %p167
      %p169 = scmp.ne.s32.totalorder %s157, %s158
      %p170 = scmp.eq.s32.totalorder %s22, 1
      %p171 = por %p169, %p170
      %p173 = scmp.ne.s32.totalorder %s158, %s172
      %p174 = scmp.eq.s32.totalorder %s22, 0
      %p175 = por %p173, %p174
      %s176 = ssub.s32 %s16, %s23
      %p177 = scmp.eq.s32.totalorder %s176, 0
      %s179 = sadd.s32 %s178, 1
      %s180 = scalar_select %p177, %s178, %s179
      %p183 = pneg %p177
      %p184 = scmp.eq.s32.totalorder %s16, 1
      %p185 = por %p183, %p184
      %p186 = scmp.ne.s32.totalorder %s178, %s181
      %p187 = scmp.eq.s32.totalorder %s16, 0
      %p188 = por %p186, %p187
      %p189 = scmp.ne.s32.totalorder %s178, %s181
      %p190 = scmp.eq.s32.totalorder %s21, 1
      %p191 = por %p189, %p190
      %p192 = scmp.ne.s32.totalorder %s181, %s182
      %p193 = scmp.eq.s32.totalorder %s21, 0
      %p194 = por %p192, %p193
      %p195 = scmp.ne.s32.totalorder %s181, %s182
      %p196 = scmp.eq.s32.totalorder %s22, 1
      %p197 = por %p195, %p196
      %p199 = scmp.ne.s32.totalorder %s182, %s198
      %p200 = scmp.eq.s32.totalorder %s22, 0
      %p201 = por %p199, %p200
      %p202 = scmp.le.s32.totalorder 1, %s16
      %p203 = scmp.lt.s32.totalorder %s16, 3
      %p204 = pnand %p202, %p203
      %p205 = pneg %p204
      // Predicated region
      $region9: #{tpu_custom_call.1} parent=5 // pred_check
        _
      $region10: #{tpu_custom_call.1} parent=5 // pred_check_branch
        %207 = sbr.rel (%p204) target = $region12
      $region11: #{tpu_custom_call.1} parent=5 // pred_region
        %s208 = ssub.s32 %s16, 1
        // Predicated region
        $region13: #{tpu_custom_call.1} parent=11 // pred_check
          %p209 = pneg %p63
        $region14: #{tpu_custom_call.1} parent=11 // pred_check_branch
          %211 = sbr.rel (%p209) target = $region16
        $region15: #{tpu_custom_call.1} parent=11 // pred_region
          _
        $region16: #{tpu_custom_call.1} parent=11 // pred_fallthru
          _
        // Predicated region
        $region17: #{tpu_custom_call.1} parent=11 // pred_check
          %p212 = pneg %p84
        $region18: #{tpu_custom_call.1} parent=11 // pred_check_branch
          %214 = sbr.rel (%p212) target = $region20
        $region19: #{tpu_custom_call.1} parent=11 // pred_region
          _
        $region20: #{tpu_custom_call.1} parent=11 // pred_fallthru
          _
        // Predicated region
        $region21: #{tpu_custom_call.1} parent=11 // pred_check
          %p215 = pneg %p105
        $region22: #{tpu_custom_call.1} parent=11 // pred_check_branch
          %217 = sbr.rel (%p215) target = $region24
        $region23: #{tpu_custom_call.1} parent=11 // pred_region
          _
        $region24: #{tpu_custom_call.1} parent=11 // pred_fallthru
          _
        // Predicated region
        $region25: #{tpu_custom_call.1} parent=11 // pred_check
          %p218 = pneg %p126
        $region26: #{tpu_custom_call.1} parent=11 // pred_check_branch
          %220 = sbr.rel (%p218) target = $region28
        $region27: #{tpu_custom_call.1} parent=11 // pred_region
          _
        $region28: #{tpu_custom_call.1} parent=11 // pred_fallthru
          _
        // Predicated region
        $region29: #{tpu_custom_call.1} parent=11 // pred_check
          %p221 = pneg %p147
        $region30: #{tpu_custom_call.1} parent=11 // pred_check_branch
          %223 = sbr.rel (%p221) target = $region32
        $region31: #{tpu_custom_call.1} parent=11 // pred_region
          _
        $region32: #{tpu_custom_call.1} parent=11 // pred_fallthru
          _
        // Predicated region
        $region33: #{tpu_custom_call.1} parent=11 // pred_check
          %p224 = pneg %p168
        $region34: #{tpu_custom_call.1} parent=11 // pred_check_branch
          %226 = sbr.rel (%p224) target = $region36
        $region35: #{tpu_custom_call.1} parent=11 // pred_region
          _
        $region36: #{tpu_custom_call.1} parent=11 // pred_fallthru
          _
      $region12: #{tpu_custom_call.1} parent=5 // pred_fallthru
        _
      %p227 = scmp.lt.s32.totalorder %s16, 2
      // Predicated region
      $region37: #{tpu_custom_call.1} parent=5 // pred_check
        %p228 = pneg %p227
      $region38: #{tpu_custom_call.1} parent=5 // pred_check_branch
        %230 = sbr.rel (%p228) target = $region40
      $region39: #{tpu_custom_call.1} parent=5 // pred_region
        // Predicated region
        $region41: #{tpu_custom_call.1} parent=39 // pred_check
          %p231 = pneg %p36
        $region42: #{tpu_custom_call.1} parent=39 // pred_check_branch
          %233 = sbr.rel (%p231) target = $region44
        $region43: #{tpu_custom_call.1} parent=39 // pred_region
          %s234 = smul.u32 2, %s16
          %p235 = scmp.lt.s32.totalorder %s234, 3
          %s236 = scalar_select %p235, %s234, 3
          %s237 = smul.addr %s236, 2
          %s238 = smul.addr %s237, 4
          %s239 = scalar_lea.vmem %s0, %s238
          %s240 = smul.u32 2, %s16
        $region44: #{tpu_custom_call.1} parent=39 // pred_fallthru
          _
      $region40: #{tpu_custom_call.1} parent=5 // pred_fallthru
        _
      %p241 = scmp.le.s32.totalorder 1, %s16
      %p242 = scmp.lt.s32.totalorder %s16, 3
      %p243 = pnand %p241, %p242
      %p244 = pneg %p243
      // Predicated region
      $region45: #{tpu_custom_call.1} parent=5 // pred_check
        _
      $region46: #{tpu_custom_call.1} parent=5 // pred_check_branch
        %246 = sbr.rel (%p243) target = $region48
      $region47: #{tpu_custom_call.1} parent=5 // pred_region
        %s247 = ssub.s32 %s16, 1
        %s248 = smul.u32 2, %s21
        %p249 = scmp.lt.s32.totalorder %s248, 3
        %s250 = scalar_select %p249, %s248, 3
        %s251 = smul.addr %s250, 2
        %s252 = smul.addr %s251, 4
        %s253 = scalar_lea.vmem %s0, %s252
        %p254 = pneg %p42
        %p255 = pneg %p39
        %p256 = pneg %p63
        %p257 = pneg %p60
        %p258 = pneg %p84
        %p259 = pneg %p81
        %p260 = pneg %p105
        %p261 = pneg %p102
        %p262 = pneg %p126
        %p263 = pneg %p123
        %p264 = pneg %p147
        %p265 = pneg %p144
        %p266 = pneg %p168
        %p267 = pneg %p165
        %p268 = pneg %p194
        %p269 = pneg %p191
        %s270 = sand.u32 %s181, 1
        %s271 = scalar_lea.sflag [#allocation3], %s270
        %s272 = sand.u32 %s181, 1
        %s273 = smul.addr %s272, 16
        %s274 = scalar_lea.vmem [#allocation2], %s273
        %s275 = smul.u32 2, %s21
        %p276 = scmp.lt.s32.totalorder %s275, 3
        %s277 = scalar_select %p276, %s275, 3
        %s278 = smul.addr %s277, 2
        %s279 = smul.addr %s278, 4
        %s280 = scalar_lea.vmem %s0, %s279
        %s281 = smul.u32 2, %s21
        %s282 = smul.u32 2, %s21
        %v284 = vld [vmem:[%s280] sm:$0xff]
        %v285 = vld [vmem:[%s280 + $0x8] sm:$0xff]
        %v286 = vunpack.c.l.bf16 %v284
        %v287 = vunpack.c.h.bf16 %v284
        %v288 = vunpack.c.l.bf16 %v285
        %v289 = vunpack.c.h.bf16 %v285
        %v290 = vld [vmem:[%s1] sm:$0xf]
        %v291 = vld [vmem:[%s1 + $0x4] sm:$0xf]
        %v292 = vld [vmem:[%s1 + $0x8] sm:$0xf]
        %v293 = vld [vmem:[%s1 + $0xc] sm:$0xf]
        %v294 = vld [vmem:[%s1 + $0x10] sm:$0xf]
        %v295 = vld [vmem:[%s1 + $0x14] sm:$0xf]
        %v296 = vld [vmem:[%s1 + $0x18] sm:$0xf]
        %v297 = vld [vmem:[%s1 + $0x1c] sm:$0xf]
        %v298 = vld [vmem:[%s1 + $0x20] sm:$0xf]
        %v299 = vld [vmem:[%s1 + $0x24] sm:$0xf]
        %v300 = vld [vmem:[%s1 + $0x28] sm:$0xf]
        %v301 = vld [vmem:[%s1 + $0x2c] sm:$0xf]
        %v302 = vld [vmem:[%s1 + $0x30] sm:$0xf]
        %v303 = vld [vmem:[%s1 + $0x34] sm:$0xf]
        %v304 = vld [vmem:[%s1 + $0x38] sm:$0xf]
        %v305 = vld [vmem:[%s1 + $0x3c] sm:$0xf]
        %v306 = vld [vmem:[%s1 + $0x40] sm:$0xf]
        %v307 = vld [vmem:[%s1 + $0x44] sm:$0xf]
        %v308 = vld [vmem:[%s1 + $0x48] sm:$0xf]
        %v309 = vld [vmem:[%s1 + $0x4c] sm:$0xf]
        %v310 = vld [vmem:[%s1 + $0x50] sm:$0xf]
        %v311 = vld [vmem:[%s1 + $0x54] sm:$0xf]
        %v312 = vld [vmem:[%s1 + $0x58] sm:$0xf]
        %v313 = vld [vmem:[%s1 + $0x5c] sm:$0xf]
        %v314 = vld [vmem:[%s1 + $0x60] sm:$0xf]
        %v315 = vld [vmem:[%s1 + $0x64] sm:$0xf]
        %v316 = vld [vmem:[%s1 + $0x68] sm:$0xf]
        %v317 = vld [vmem:[%s1 + $0x6c] sm:$0xf]
        %v318 = vld [vmem:[%s1 + $0x70] sm:$0xf]
        %v319 = vld [vmem:[%s1 + $0x74] sm:$0xf]
        %v320 = vld [vmem:[%s1 + $0x78] sm:$0xf]
        %v321 = vld [vmem:[%s1 + $0x7c] sm:$0xf]
        %v322 = vld [vmem:[%s2] sm:$0x1]
        %v324 = vlaneseq
        %v325 = vshrl.u32 %v324, 7
        %v326 = vsub.s32 0, %v325
        %v327 = vrot.slane %v322, %v326
        %v331 = vunpack.c.l.b16 %v284
        %v332 = vunpack.c.h.b16 %v284
        %v333 = vunpack.c.l.b16 %v285
        %v334 = vunpack.c.h.b16 %v285
        %v335 = vpack.c.b16 %v333, %v331
        %v336 = vpack.c.b16 %v334, %v332
        %v371 = vunpack.c.l.b16 %v290
        %v372 = vunpack.c.l.b16 %v291
        %v373 = vunpack.c.l.b16 %v292
        %v374 = vunpack.c.l.b16 %v293
        %v375 = vunpack.c.l.b16 %v294
        %v376 = vunpack.c.l.b16 %v295
        %v377 = vunpack.c.l.b16 %v296
        %v378 = vunpack.c.l.b16 %v297
        %v379 = vunpack.c.l.b16 %v298
        %v380 = vunpack.c.l.b16 %v299
        %v381 = vunpack.c.l.b16 %v300
        %v382 = vunpack.c.l.b16 %v301
        %v383 = vunpack.c.l.b16 %v302
        %v384 = vunpack.c.l.b16 %v303
        %v385 = vunpack.c.l.b16 %v304
        %v386 = vunpack.c.l.b16 %v305
        %v387 = vunpack.c.l.b16 %v306
        %v388 = vunpack.c.l.b16 %v307
        %v389 = vunpack.c.l.b16 %v308
        %v390 = vunpack.c.l.b16 %v309
        %v391 = vunpack.c.l.b16 %v310
        %v392 = vunpack.c.l.b16 %v311
        %v393 = vunpack.c.l.b16 %v312
        %v394 = vunpack.c.l.b16 %v313
        %v395 = vunpack.c.l.b16 %v314
        %v396 = vunpack.c.l.b16 %v315
        %v397 = vunpack.c.l.b16 %v316
        %v398 = vunpack.c.l.b16 %v317
        %v399 = vunpack.c.l.b16 %v318
        %v400 = vunpack.c.l.b16 %v319
        %v401 = vunpack.c.l.b16 %v320
        %v402 = vunpack.c.l.b16 %v321
        %v403 = vpack.c.b16 %v372, %v371
        %v404 = vpack.c.b16 %v374, %v373
        %v405 = vpack.c.b16 %v376, %v375
        %v406 = vpack.c.b16 %v378, %v377
        %v407 = vpack.c.b16 %v380, %v379
        %v408 = vpack.c.b16 %v382, %v381
        %v409 = vpack.c.b16 %v384, %v383
        %v410 = vpack.c.b16 %v386, %v385
        %v411 = vpack.c.b16 %v388, %v387
        %v412 = vpack.c.b16 %v390, %v389
        %v413 = vpack.c.b16 %v392, %v391
        %v414 = vpack.c.b16 %v394, %v393
        %v415 = vpack.c.b16 %v396, %v395
        %v416 = vpack.c.b16 %v398, %v397
        %v417 = vpack.c.b16 %v400, %v399
        %v418 = vpack.c.b16 %v402, %v401
        %435 = vmatprep.subr.bf16.mxu0 0
        %436 = vmatpush1.bf16.msra.mxu0 %v403
        %437 = vmatprep.subr.bf16.mxu0 0
        %438 = vmatpush1.bf16.msra.mxu0 %v404
        %439 = vmatprep.subr.bf16.mxu0 0
        %440 = vmatpush1.bf16.msra.mxu0 %v405
        %441 = vmatprep.subr.bf16.mxu0 0
        %442 = vmatpush1.bf16.msra.mxu0 %v406
        %443 = vmatprep.subr.bf16.mxu0 0
        %444 = vmatpush1.bf16.msra.mxu0 %v407
        %445 = vmatprep.subr.bf16.mxu0 0
        %446 = vmatpush1.bf16.msra.mxu0 %v408
        %447 = vmatprep.subr.bf16.mxu0 0
        %448 = vmatpush1.bf16.msra.mxu0 %v409
        %449 = vmatprep.subr.bf16.mxu0 0
        %450 = vmatpush1.bf16.msra.mxu0 %v410
        %451 = vmatprep.subr.bf16.mxu0 0
        %452 = vmatpush1.bf16.msra.mxu0 %v411
        %453 = vmatprep.subr.bf16.mxu0 0
        %454 = vmatpush1.bf16.msra.mxu0 %v412
        %455 = vmatprep.subr.bf16.mxu0 0
        %456 = vmatpush1.bf16.msra.mxu0 %v413
        %457 = vmatprep.subr.bf16.mxu0 0
        %458 = vmatpush1.bf16.msra.mxu0 %v414
        %459 = vmatprep.subr.bf16.mxu0 0
        %460 = vmatpush1.bf16.msra.mxu0 %v415
        %461 = vmatprep.subr.bf16.mxu0 0
        %462 = vmatpush1.bf16.msra.mxu0 %v416
        %463 = vmatprep.subr.bf16.mxu0 0
        %464 = vmatpush1.bf16.msra.mxu0 %v417
        %465 = vmatprep.subr.bf16.mxu0 0
        %466 = vmatpush1.bf16.msra.mxu0 %v418
        %467 = vmatprep.mubr.bf16.mxu0 %v336
        %468 = vmatmul.mubr.bf16.gmra.mrb[0].mxu0 %v335
        %v469 = vpop.f32.mrb[0].mxu0
        %v470 = vadd.f32 %v327, %v469
        %v471 = vpop.f32.mrb[0].mxu0
        %v472 = vpop.f32.mrb[0].mxu0
        %v473 = vadd.f32 %v327, %v472
        %v474 = vpop.f32.mrb[0].mxu0
        %475 = vdwg.mxu0
        %v476 = vmax.f32 %v470, 0.0
        %v477 = vmax.f32 %v473, 0.0
        %v478 = vlaneseq
        %v479 = vshrl.u32 %v478, 7
        %v480 = vadd.s32 %v479, 8
        %vm481 = vcmp.lt.s32.totalorder %v479, 0
        %v482 = vsub.s32 0, %v479
        %v483 = vsel %vm481, %v482, %v479
        %v484 = vshrl.u32 %v483, 4
        %v485 = vand.u32 %v483, 15
        %v486 = vsub.s32 0, %v485
        %v487 = vsel %vm481, %v486, %v485
        %vm488 = vcmp.lt.s32.totalorder %v480, 0
        %v489 = vsub.s32 0, %v480
        %v490 = vsel %vm488, %v489, %v480
        %v491 = vshrl.u32 %v490, 4
        %v492 = vand.u32 %v490, 15
        %v493 = vsub.s32 0, %v492
        %v494 = vsel %vm488, %v493, %v492
        %vm495 = vcmp.ne.s32.totalorder %v487, 0
        %vm496 = vcmp.ne.s32.totalorder %v494, 0
        %vm497 = vcmp.lt.s32.totalorder %v487, 0
        %vm498 = vcmp.lt.s32.totalorder %v494, 0
        %vm499 = vmand %vm497, %vm495
        %vm500 = vmand %vm498, %vm496
        %v501 = vadd.s32 %v487, 16
        %v502 = vadd.s32 %v494, 16
        %v503 = vsel %vm499, %v501, %v487
        %v504 = vsel %vm500, %v502, %v494
        %vm505 = vcmp.eq.s32.totalorder %v503, 0
        %vm506 = vcmp.eq.s32.totalorder %v504, 0
        %v507 = vrot.slane %v476, 7
        %v508 = vrot.slane %v477, 7
        %vm509 = vcmp.lt.s32.totalorder %v479, 1
        %v510 = vsel %vm509, %v507, %v508
        %v511 = vsel %vm509, %v508, %v507
        %v512 = vsel %vm505, 0.0, %v511
        %v513 = vsel %vm506, 0.0, %v510
        %vm514 = vcmp.eq.s32.totalorder %v503, 15
        %vm515 = vcmp.eq.s32.totalorder %v504, 15
        %v516 = vrot.slane %v476, 1
        %v517 = vrot.slane %v477, 1
        %vm518 = vcmp.lt.s32.totalorder %v479, 7
        %v519 = vsel %vm518, %v516, %v517
        %v520 = vsel %vm518, %v517, %v516
        %v521 = vsel %vm514, 0.0, %v519
        %v522 = vsel %vm515, 0.0, %v520
        %525 = vrot.lane.b32.xlu0 %v476, 64
        %v526 = vpop.permute.xlu0 %525
        %527 = vrot.lane.b32.xlu0 %v477, 64
        %v528 = vpop.permute.xlu0 %527
        %vm531 = vcmask 523264
        %v532 = vsel %vm531, %v512, %v526
        %v533 = vsel %vm531, %v513, %v528
        %v534 = vpack.c.bf16 %v533, %v532
        %v535 = vpack.c.bf16 %v522, %v521
        %v536 = vld [vmem:[%s3] sm:$0xf]
        %v537 = vld [vmem:[%s3 + $0x4] sm:$0xf]
        %v538 = vld [vmem:[%s3 + $0x8] sm:$0xf]
        %v539 = vld [vmem:[%s3 + $0xc] sm:$0xf]
        %v540 = vld [vmem:[%s3 + $0x10] sm:$0xf]
        %v541 = vld [vmem:[%s3 + $0x14] sm:$0xf]
        %v542 = vld [vmem:[%s3 + $0x18] sm:$0xf]
        %v543 = vld [vmem:[%s3 + $0x1c] sm:$0xf]
        %v544 = vld [vmem:[%s3 + $0x20] sm:$0xf]
        %v545 = vld [vmem:[%s3 + $0x24] sm:$0xf]
        %v546 = vld [vmem:[%s3 + $0x28] sm:$0xf]
        %v547 = vld [vmem:[%s3 + $0x2c] sm:$0xf]
        %v548 = vld [vmem:[%s3 + $0x30] sm:$0xf]
        %v549 = vld [vmem:[%s3 + $0x34] sm:$0xf]
        %v550 = vld [vmem:[%s3 + $0x38] sm:$0xf]
        %v551 = vld [vmem:[%s3 + $0x3c] sm:$0xf]
        %v552 = vld [vmem:[%s3 + $0x40] sm:$0xf]
        %v553 = vld [vmem:[%s3 + $0x44] sm:$0xf]
        %v554 = vld [vmem:[%s3 + $0x48] sm:$0xf]
        %v555 = vld [vmem:[%s3 + $0x4c] sm:$0xf]
        %v556 = vld [vmem:[%s3 + $0x50] sm:$0xf]
        %v557 = vld [vmem:[%s3 + $0x54] sm:$0xf]
        %v558 = vld [vmem:[%s3 + $0x58] sm:$0xf]
        %v559 = vld [vmem:[%s3 + $0x5c] sm:$0xf]
        %v560 = vld [vmem:[%s4] sm:$0x1]
        %v562 = vlaneseq
        %v563 = vshrl.u32 %v562, 7
        %v564 = vsub.s32 0, %v563
        %v565 = vrot.slane %v560, %v564
        %v591 = vunpack.c.l.b16 %v536
        %v592 = vunpack.c.l.b16 %v537
        %v593 = vunpack.c.l.b16 %v538
        %v594 = vunpack.c.l.b16 %v539
        %v595 = vunpack.c.l.b16 %v540
        %v596 = vunpack.c.l.b16 %v541
        %v597 = vunpack.c.l.b16 %v542
        %v598 = vunpack.c.l.b16 %v543
        %v599 = vunpack.c.l.b16 %v544
        %v600 = vunpack.c.l.b16 %v545
        %v601 = vunpack.c.l.b16 %v546
        %v602 = vunpack.c.l.b16 %v547
        %v603 = vunpack.c.l.b16 %v548
        %v604 = vunpack.c.l.b16 %v549
        %v605 = vunpack.c.l.b16 %v550
        %v606 = vunpack.c.l.b16 %v551
        %v607 = vunpack.c.l.b16 %v552
        %v608 = vunpack.c.l.b16 %v553
        %v609 = vunpack.c.l.b16 %v554
        %v610 = vunpack.c.l.b16 %v555
        %v611 = vunpack.c.l.b16 %v556
        %v612 = vunpack.c.l.b16 %v557
        %v613 = vunpack.c.l.b16 %v558
        %v614 = vunpack.c.l.b16 %v559
        %v615 = vpack.c.b16 %v592, %v591
        %v616 = vpack.c.b16 %v594, %v593
        %v617 = vpack.c.b16 %v596, %v595
        %v618 = vpack.c.b16 %v598, %v597
        %v619 = vpack.c.b16 %v600, %v599
        %v620 = vpack.c.b16 %v602, %v601
        %v621 = vpack.c.b16 %v604, %v603
        %v622 = vpack.c.b16 %v606, %v605
        %v623 = vpack.c.b16 %v608, %v607
        %v624 = vpack.c.b16 %v610, %v609
        %v625 = vpack.c.b16 %v612, %v611
        %v626 = vpack.c.b16 %v614, %v613
        %v640 = vsel %vm531, %v535, 0
        %642 = vmatprep.subr.bf16.mxu0 0
        %643 = vmatpush1.bf16.msra.mxu0 %v615
        %644 = vmatprep.subr.bf16.mxu0 0
        %645 = vmatpush1.bf16.msra.mxu0 %v616
        %646 = vmatprep.subr.bf16.mxu0 0
        %647 = vmatpush1.bf16.msra.mxu0 %v617
        %648 = vmatprep.subr.bf16.mxu0 0
        %649 = vmatpush1.bf16.msra.mxu0 %v618
        %650 = vmatprep.subr.bf16.mxu0 0
        %651 = vmatpush1.bf16.msra.mxu0 %v619
        %652 = vmatprep.subr.bf16.mxu0 0
        %653 = vmatpush1.bf16.msra.mxu0 %v620
        %654 = vmatprep.subr.bf16.mxu0 0
        %655 = vmatpush1.bf16.msra.mxu0 %v621
        %656 = vmatprep.subr.bf16.mxu0 0
        %657 = vmatpush1.bf16.msra.mxu0 %v622
        %658 = vmatprep.subr.bf16.mxu0 0
        %659 = vmatpush1.bf16.msra.mxu0 %v623
        %660 = vmatprep.subr.bf16.mxu0 0
        %661 = vmatpush1.bf16.msra.mxu0 %v624
        %662 = vmatprep.subr.bf16.mxu0 0
        %663 = vmatpush1.bf16.msra.mxu0 %v625
        %664 = vmatprep.subr.bf16.mxu0 0
        %665 = vmatpush1.bf16.msra.mxu0 %v626
        %666 = vmatprep.subr.bf16.mxu0 0
        %667 = vmatpush1.bf16.msra.mxu0 0
        %668 = vmatprep.subr.bf16.mxu0 0
        %669 = vmatpush1.bf16.msra.mxu0 0
        %670 = vmatprep.subr.bf16.mxu0 0
        %671 = vmatpush1.bf16.msra.mxu0 0
        %672 = vmatprep.subr.bf16.mxu0 0
        %673 = vmatpush1.bf16.msra.mxu0 0
        %674 = vmatprep.mubr.bf16.mxu0 %v640
        %675 = vmatmul.mubr.bf16.gmra.mrb[0].mxu0 %v534
        %v676 = vpop.f32.mrb[0].mxu0
        %v677 = vadd.f32 %v565, %v676
        %v678 = vpop.f32.mrb[0].mxu0
        %v679 = vpop.f32.mrb[0].mxu0
        %v680 = vadd.f32 %v565, %v679
        %v681 = vpop.f32.mrb[0].mxu0
        %682 = vdwg.mxu0
        %v683 = vmax.f32 %v677, 0.0
        %v684 = vmax.f32 %v680, 0.0
        %v685 = vpack.c.bf16 %v684, %v683
        %v686 = vld [vmem:[%s5] sm:$0xff]
        %v687 = vld [vmem:[%s5 + $0x8] sm:$0xff]
        %v688 = vld [vmem:[%s5 + $0x10] sm:$0xff]
        %v689 = vld [vmem:[%s5 + $0x18] sm:$0xff]
        %v690 = vld [vmem:[%s5 + $0x20] sm:$0xff]
        %v691 = vld [vmem:[%s5 + $0x28] sm:$0xff]
        %v692 = vld [vmem:[%s5 + $0x30] sm:$0xff]
        %v693 = vld [vmem:[%s5 + $0x38] sm:$0xff]
        %v694 = vld [vmem:[%s6] sm:$0x3]
        %v696 = vlaneseq
        %v697 = vshrl.u32 %v696, 7
        %v698 = vsub.s32 0, %v697
        %v699 = vrot.slane %v694, %v698
        %v700 = vlaneseq
        %v701 = vshrl.u32 %v700, 7
        %v702 = vsub.s32 1, %v701
        %v703 = vrot.slane %v694, %v702
        %v714 = vunpack.c.l.b16 %v686
        %v715 = vunpack.c.h.b16 %v686
        %v716 = vunpack.c.l.b16 %v687
        %v717 = vunpack.c.h.b16 %v687
        %v718 = vunpack.c.l.b16 %v688
        %v719 = vunpack.c.h.b16 %v688
        %v720 = vunpack.c.l.b16 %v689
        %v721 = vunpack.c.h.b16 %v689
        %v722 = vunpack.c.l.b16 %v690
        %v723 = vunpack.c.h.b16 %v690
        %v724 = vunpack.c.l.b16 %v691
        %v725 = vunpack.c.h.b16 %v691
        %v726 = vunpack.c.l.b16 %v692
        %v727 = vunpack.c.h.b16 %v692
        %v728 = vunpack.c.l.b16 %v693
        %v729 = vunpack.c.h.b16 %v693
        %v730 = vpack.c.b16 %v716, %v714
        %v731 = vpack.c.b16 %v717, %v715
        %v732 = vpack.c.b16 %v720, %v718
        %v733 = vpack.c.b16 %v721, %v719
        %v734 = vpack.c.b16 %v724, %v722
        %v735 = vpack.c.b16 %v725, %v723
        %v736 = vpack.c.b16 %v728, %v726
        %v737 = vpack.c.b16 %v729, %v727
        %v747 = vsel %vm531, %v685, 0
        %749 = vmatprep.subr.bf16.mxu0 %v731
        %750 = vmatpush1.bf16.msra.mxu0 %v730
        %751 = vmatprep.subr.bf16.mxu0 %v733
        %752 = vmatpush1.bf16.msra.mxu0 %v732
        %753 = vmatprep.subr.bf16.mxu0 %v735
        %754 = vmatpush1.bf16.msra.mxu0 %v734
        %755 = vmatprep.subr.bf16.mxu0 %v737
        %756 = vmatpush1.bf16.msra.mxu0 %v736
        %757 = vmatprep.subr.bf16.mxu0 0
        %758 = vmatpush1.bf16.msra.mxu0 0
        %759 = vmatprep.subr.bf16.mxu0 0
        %760 = vmatpush1.bf16.msra.mxu0 0
        %761 = vmatprep.subr.bf16.mxu0 0
        %762 = vmatpush1.bf16.msra.mxu0 0
        %763 = vmatprep.subr.bf16.mxu0 0
        %764 = vmatpush1.bf16.msra.mxu0 0
        %765 = vmatprep.subr.bf16.mxu0 0
        %766 = vmatpush1.bf16.msra.mxu0 0
        %767 = vmatprep.subr.bf16.mxu0 0
        %768 = vmatpush1.bf16.msra.mxu0 0
        %769 = vmatprep.subr.bf16.mxu0 0
        %770 = vmatpush1.bf16.msra.mxu0 0
        %771 = vmatprep.subr.bf16.mxu0 0
        %772 = vmatpush1.bf16.msra.mxu0 0
        %773 = vmatprep.subr.bf16.mxu0 0
        %774 = vmatpush1.bf16.msra.mxu0 0
        %775 = vmatprep.subr.bf16.mxu0 0
        %776 = vmatpush1.bf16.msra.mxu0 0
        %777 = vmatprep.subr.bf16.mxu0 0
        %778 = vmatpush1.bf16.msra.mxu0 0
        %779 = vmatprep.subr.bf16.mxu0 0
        %780 = vmatpush1.bf16.msra.mxu0 0
        %781 = vmatprep.mubr.bf16.mxu0 0
        %782 = vmatmul.mubr.bf16.gmra.mrb[0].mxu0 %v747
        %v783 = vpop.f32.mrb[0].mxu0
        %v784 = vadd.f32 %v699, %v783
        %v785 = vpop.f32.mrb[0].mxu0
        %v786 = vadd.f32 %v703, %v785
        %v787 = vpop.f32.mrb[0].mxu0
        %v788 = vadd.f32 %v699, %v787
        %v789 = vpop.f32.mrb[0].mxu0
        %v790 = vadd.f32 %v703, %v789
        %791 = vdwg.mxu0
        %v792 = vadd.f32 %v784, %v286
        %v793 = vadd.f32 %v786, %v287
        %v794 = vadd.f32 %v788, %v288
        %v795 = vadd.f32 %v790, %v289
        %v796 = vmax.f32 %v792, 0.0
        %v797 = vmax.f32 %v793, 0.0
        %v798 = vmax.f32 %v794, 0.0
        %v799 = vmax.f32 %v795, 0.0
        %v800 = vpack.c.bf16 %v798, %v796
        %v801 = vpack.c.bf16 %v799, %v797
        %v804 = vunpack.c.l.b16 %v800
        %v805 = vunpack.c.l.b16 %v801
        %v806 = vunpack.c.h.b16 %v800
        %v807 = vunpack.c.h.b16 %v801
        %v808 = vpack.c.b16 %v805, %v804
        %v809 = vpack.c.b16 %v807, %v806
        %812 = vst [vmem:[%s274] sm:$0xff] %v808
        %813 = vst [vmem:[%s274 + $0x8] sm:$0xff] %v809
        %s814 = sand.u32 %s181, 1
        %s815 = scalar_lea.sflag [#allocation3], %s814
        %s816 = sand.u32 %s181, 1
        %s817 = smul.addr %s816, 16
        %s818 = scalar_lea.vmem [#allocation2], %s817
        // Predicated region
        $region49: #{tpu_custom_call.1} parent=47 // pred_check
          %p819 = pneg %p191
        $region50: #{tpu_custom_call.1} parent=47 // pred_check_branch
          %821 = sbr.rel (%p819) target = $region52
        $region51: #{tpu_custom_call.1} parent=47 // pred_region
          %s822 = smul.u32 2, %s21
          %s824 = ssub.s32 256, 256
          %825 = vsyncadd %s815, %s824
          %s826 = smul.addr %s822, 2
          %s827 = smul.addr %s826, 64
          %s828 = scalar_lea.hbm %s7, %s827
          %s829 = sshll.u32 %s818, 4
          %s830 = int_to_ptr.vmem [resolvable:$true] %s829
          %835 = dma.vmem_to_hbm [thread:$0]  %s830, 256, %s828, %s815, 128, 128, 8
        $region52: #{tpu_custom_call.1} parent=47 // pred_fallthru
          _
      $region48: #{tpu_custom_call.1} parent=5 // pred_fallthru
        _
      %p836 = scmp.le.s32.totalorder 2, %s16
      // Predicated region
      $region53: #{tpu_custom_call.1} parent=5 // pred_check
        %p837 = pneg %p836
      $region54: #{tpu_custom_call.1} parent=5 // pred_check_branch
        %839 = sbr.rel (%p837) target = $region56
      $region55: #{tpu_custom_call.1} parent=5 // pred_region
        %s840 = ssub.s32 %s16, 2
        // Predicated region
        $region57: #{tpu_custom_call.1} parent=55 // pred_check
          %p841 = pneg %p197
        $region58: #{tpu_custom_call.1} parent=55 // pred_check_branch
          %843 = sbr.rel (%p841) target = $region60
        $region59: #{tpu_custom_call.1} parent=55 // pred_region
          %s844 = sand.u32 %s182, 1
          %s845 = scalar_lea.sflag [#allocation3], %s844
          %s846 = sand.u32 %s182, 1
          %s847 = smul.addr %s846, 16
          %s848 = scalar_lea.vmem [#allocation2], %s847
          %849 = dma.done %s845, 256
        $region60: #{tpu_custom_call.1} parent=55 // pred_fallthru
          _
      $region56: #{tpu_custom_call.1} parent=5 // pred_fallthru
        _
    $region6: #{tpu_custom_call.1} parent=1 // loop_footer
      %s20 = sadd.s32 1, %s16
    $region7: #{tpu_custom_call.1} parent=1 // loop_footer_branch
      %15 = sbr.rel target = $region3
    $region8: #{tpu_custom_call.1} parent=1 // loop_exit
      _
    %850 = vsyncpa [#allocation3], 1
    %s851 = scalar_lea.sflag [#allocation3], 1
    %852 = vsyncpa %s851, 1

</llo_original>
